<compile_context>
chip_gen: v5e
topology: v5e:2x2
jax: 0.10.0
libtpu: 0.0.40
codegen_flags: <defaults>
</compile_context>

<pallas_src>
import jax
import jax.numpy as jnp
from jax.experimental import pallas as pl
from jax.experimental.pallas import tpu as pltpu


def _round_up(v, m):
    return ((v + m - 1) // m) * m


# ---------------------------------------------------------------------------
# Kernel
# ---------------------------------------------------------------------------
def a2c_kernel(x_ref, w1_ref, b1_ref, w2_ref, b2_ref, wh_ref, bh_ref, out_ref):
    # In-kernel cast: x streams from HBM as f32, bf16 only for the MXU operands.
    x = x_ref[...].astype(jnp.bfloat16)                       # (TILE_B, IN)

    # l1 + LeakyReLU(0.01)   (f32 accumulation on the MXU)
    h1 = jnp.dot(x, w1_ref[...], preferred_element_type=jnp.float32) + b1_ref[...]
    h1 = jnp.where(h1 > 0, h1, 0.01 * h1).astype(jnp.bfloat16)

    # l2 + LeakyReLU(0.01)
    h2 = jnp.dot(h1, w2_ref[...], preferred_element_type=jnp.float32) + b2_ref[...]
    h2 = jnp.where(h2 > 0, h2, 0.01 * h2).astype(jnp.bfloat16)

    # Fused [policy | value] head -> one narrow (TILE_B, NOUT) f32 store.
    out_ref[...] = (
        jnp.dot(h2, wh_ref[...], preferred_element_type=jnp.float32) + bh_ref[...]
    )


# ---------------------------------------------------------------------------
# Parameter prep: fuse heads, minimal padding, bf16 weights / f32 biases.
# ---------------------------------------------------------------------------
def prepare_params(p, in_feat, n_actions, hid_size):
    IN = _round_up(in_feat, 8)            # sublane multiple only — NOT 128 lanes
    HID = _round_up(hid_size, 128)        # hidden stays lane-dense for the MXU
    NOUT = _round_up(n_actions + 1, 8)    # narrow fused output: [logits | value | pad]

    wh = jnp.concatenate([p["wp"], p["wv"]], axis=1)   # (hid, n_actions+1)
    bh = jnp.concatenate([p["bp"], p["bv"]], axis=1)   # (1,  n_actions+1)

    def pad2(a, r, c):
        return jnp.pad(a, ((0, r - a.shape[0]), (0, c - a.shape[1])))

    kp = {
        "w1": pad2(p["w1"], IN, HID).astype(jnp.bfloat16),
        "b1": pad2(p["b1"], 1, HID),                       # f32
        "w2": pad2(p["w2"], HID, HID).astype(jnp.bfloat16),
        "b2": pad2(p["b2"], 1, HID),                       # f32
        "wh": pad2(wh, HID, NOUT).astype(jnp.bfloat16),
        "bh": pad2(bh, 1, NOUT),                           # f32
    }
    return kp, (IN, HID, NOUT)


# ---------------------------------------------------------------------------
# Tiling / VMEM helpers
# ---------------------------------------------------------------------------
def _choose_tile_b(B, tile_b_max=1024):
    """Batch tile: multiple of 16 (bf16 sublane pack); >=2 grid steps when B
    allows (v7x has 2 TensorCores); pad waste capped at ~6% of B."""
    b16 = _round_up(max(B, 1), 16)
    if b16 <= 16:
        return 16
    tile = max(16, min(tile_b_max, _round_up(b16 // 2, 16)))   # >= 2 grid steps
    while tile > 16 and (_round_up(B, tile) - B) * 16 > B:     # > ~6.25% pad waste
        tile -= 16
    return tile


def _vmem_limit_bytes(tile_b, IN, HID, NOUT):
    bf2, f4 = 2, 4
    stream = 2 * tile_b * (IN + NOUT) * f4                    # double-buffered x / out
    weights = 2 * (IN * HID + HID * HID + HID * NOUT) * bf2   # resident (conservative 2x)
    biases = 2 * (2 * HID + NOUT) * f4
    live = 2 * tile_b * HID * (f4 + bf2)                      # h1/h2 f32 + bf16 temps
    budget = stream + weights + biases + live
    # Generous headroom; floor at the v5e scoped default, cap at v7x physical.
    return int(min(64 << 20, max(16 << 20, 2 * budget)))


# ---------------------------------------------------------------------------
# Wrapper
# ---------------------------------------------------------------------------
def a2c_forward(x, kp, dims, n_actions, *, tile_b_max=1024):
    IN, HID, NOUT = dims
    B, in_feat = x.shape

    tile_b = _choose_tile_b(B, tile_b_max)
    B_pad = _round_up(B, tile_b)

    # Pad only batch rows (and <=7 feature lanes); x stays f32 (cast in-kernel).
    if B_pad == B and IN == in_feat:
        x_p = x
    else:
        x_p = jnp.pad(x, ((0, B_pad - B), (0, IN - in_feat)))

    flops = 2 * B_pad * (IN * HID + HID * HID + HID * NOUT)
    bytes_accessed = (
        B_pad * IN * 4 + B_pad * NOUT * 4                 # x in, fused head out
        + (IN * HID + HID * HID + HID * NOUT) * 2         # bf16 weights
        + (2 * HID + NOUT) * 4                            # f32 biases
    )

    out = pl.pallas_call(
        a2c_kernel,
        out_shape=jax.ShapeDtypeStruct((B_pad, NOUT), jnp.float32),
        grid=(B_pad // tile_b,),
        in_specs=[
            pl.BlockSpec((tile_b, IN), lambda i: (i, 0)),   # x: blocked on batch (f32)
            pl.BlockSpec((IN, HID), lambda i: (0, 0)),      # w1: VMEM-resident
            pl.BlockSpec((1, HID), lambda i: (0, 0)),       # b1
            pl.BlockSpec((HID, HID), lambda i: (0, 0)),     # w2
            pl.BlockSpec((1, HID), lambda i: (0, 0)),       # b2
            pl.BlockSpec((HID, NOUT), lambda i: (0, 0)),    # fused [policy|value] weight
            pl.BlockSpec((1, NOUT), lambda i: (0, 0)),      # fused head bias
        ],
        out_specs=pl.BlockSpec((tile_b, NOUT), lambda i: (i, 0)),
        compiler_params=pltpu.CompilerParams(
            dimension_semantics=("parallel",),              # shards across v7x's 2 TCs
            vmem_limit_bytes=_vmem_limit_bytes(tile_b, IN, HID, NOUT),
        ),
        cost_estimate=pl.CostEstimate(
            flops=flops, transcendentals=0, bytes_accessed=bytes_accessed),
    )(x_p, kp["w1"], kp["b1"], kp["w2"], kp["b2"], kp["wh"], kp["bh"])

    # Single slice of valid rows, then split the tiny (B, NOUT) array.
    head = out[:B]
    logits = head[:, :n_actions]
    values = head[:, n_actions:n_actions + 1]
    return logits, values


# ---------------------------------------------------------------------------
# Synthetic init + references
# ---------------------------------------------------------------------------
def init_params(key, in_feat, n_actions, hid_size):
    """Deterministic synthetic init (not a checkpoint load). (in, out) layout."""
    ks = jax.random.split(key, 8)
    scale = 0.1
    return {
        "w1": scale * jax.random.normal(ks[0], (in_feat, hid_size), jnp.float32),
        "b1": scale * jax.random.normal(ks[1], (1, hid_size), jnp.float32),
        "w2": scale * jax.random.normal(ks[2], (hid_size, hid_size), jnp.float32),
        "b2": scale * jax.random.normal(ks[3], (1, hid_size), jnp.float32),
        "wp": scale * jax.random.normal(ks[4], (hid_size, n_actions), jnp.float32),
        "bp": scale * jax.random.normal(ks[5], (1, n_actions), jnp.float32),
        "wv": scale * jax.random.normal(ks[6], (hid_size, 1), jnp.float32),
        "bv": scale * jax.random.normal(ks[7], (1, 1), jnp.float32),
    }


def a2c_ref_f32(x, p):
    """True f32 reference == PyTorch A2CNetwork.forward semantics."""
    leaky = lambda v: jnp.where(v > 0, v, 0.01 * v)
    h1 = leaky(x @ p["w1"] + p["b1"])
    h2 = leaky(h1 @ p["w2"] + p["b2"])
    return h2 @ p["wp"] + p["bp"], h2 @ p["wv"] + p["bv"]


def a2c_ref_bf16(x, p):
    """Reference mirroring the kernel's bf16-weights / f32-accum path."""
    leaky = lambda v: jnp.where(v > 0, v, 0.01 * v)
    bf = jnp.bfloat16
    h1 = leaky(jnp.dot(x.astype(bf), p["w1"].astype(bf),
                       preferred_element_type=jnp.float32) + p["b1"]).astype(bf)
    h2 = leaky(jnp.dot(h1, p["w2"].astype(bf),
                       preferred_element_type=jnp.float32) + p["b2"]).astype(bf)
    logits = jnp.dot(h2, p["wp"].astype(bf),
                     preferred_element_type=jnp.float32) + p["bp"]
    values = jnp.dot(h2, p["wv"].astype(bf),
                     preferred_element_type=jnp.float32) + p["bv"]
    return logits, values


if __name__ == "__main__":
    B, in_feat, n_actions, hid_size = 8, 16, 6, 32

    key = jax.random.PRNGKey(0)
    k_x, k_p = jax.random.split(key)
    x = jax.random.normal(k_x, (B, in_feat), jnp.float32)
    params = init_params(k_p, in_feat, n_actions, hid_size)

    kparams, dims = prepare_params(params, in_feat, n_actions, hid_size)

    logits, values = a2c_forward(x, kparams, dims, n_actions)
    jax.block_until_ready((logits, values))

    assert logits.shape == (B, n_actions) and values.shape == (B, 1)

    # Tight self-consistency vs a reference matching the kernel's bf16 path.
    bl, bv = a2c_ref_bf16(x, params)
    assert jnp.allclose(logits, bl, atol=1e-4, rtol=1e-4)
    assert jnp.allclose(values, bv, atol=1e-4, rtol=1e-4)

    # Fidelity vs the true f32 PyTorch forward (bf16-appropriate tolerance).
    fl, fv = a2c_ref_f32(x, params)
    assert jnp.allclose(logits, fl, atol=2e-2, rtol=2e-2)
    assert jnp.allclose(values, fv, atol=2e-2, rtol=2e-2)

    print("KERNEL_OK")
</pallas_src>

<mosaic_0001>
module attributes {stable_mosaic.version = 11 : i64} {
  func.func @a2c_kernel(%arg0: i32, %arg1: memref<16x16xf32, #tpu.memory_space<vmem>>, %arg2: memref<16x128xbf16, #tpu.memory_space<vmem>>, %arg3: memref<1x128xf32, #tpu.memory_space<vmem>>, %arg4: memref<128x128xbf16, #tpu.memory_space<vmem>>, %arg5: memref<1x128xf32, #tpu.memory_space<vmem>>, %arg6: memref<128x8xbf16, #tpu.memory_space<vmem>>, %arg7: memref<1x8xf32, #tpu.memory_space<vmem>>, %arg8: memref<16x8xf32, #tpu.memory_space<vmem>>) attributes {dimension_semantics = [#tpu.dimension_semantics<parallel>], iteration_bounds = array<i64: 1>, scalar_prefetch = 0 : i64, scratch_operands = 0 : i64, tpu.core_type = #tpu.core_type<tc>, window_params = [{transform_indices = @transform_0, window_bounds = array<i64: 16, 16>}, {pipeline_mode = #tpu.pipeline_mode<synchronous>, transform_indices = @transform_1, window_bounds = array<i64: 16, 128>}, {pipeline_mode = #tpu.pipeline_mode<synchronous>, transform_indices = @transform_2, window_bounds = array<i64: 1, 128>}, {pipeline_mode = #tpu.pipeline_mode<synchronous>, transform_indices = @transform_3, window_bounds = array<i64: 128, 128>}, {pipeline_mode = #tpu.pipeline_mode<synchronous>, transform_indices = @transform_4, window_bounds = array<i64: 1, 128>}, {pipeline_mode = #tpu.pipeline_mode<synchronous>, transform_indices = @transform_5, window_bounds = array<i64: 128, 8>}, {pipeline_mode = #tpu.pipeline_mode<synchronous>, transform_indices = @transform_6, window_bounds = array<i64: 1, 8>}, {transform_indices = @transform_7, window_bounds = array<i64: 16, 8>}]} {
    %c0 = arith.constant 0 : index
    %c0_0 = arith.constant 0 : index
    %0 = vector.load %arg1[%c0, %c0_0] : memref<16x16xf32, #tpu.memory_space<vmem>>, vector<16x16xf32>
    %1 = arith.truncf %0 : vector<16x16xf32> to vector<16x16xbf16>
    %c0_1 = arith.constant 0 : index
    %c0_2 = arith.constant 0 : index
    %2 = vector.load %arg2[%c0_1, %c0_2] : memref<16x128xbf16, #tpu.memory_space<vmem>>, vector<16x128xbf16>
    %cst = arith.constant dense<0.000000e+00> : vector<16x128xf32>
    %3 = tpu.matmul %1, %2, %cst {dimension_numbers = #tpu.dot_dimension_numbers<[1], [0], [0], [1], [0, 0, 1, 1], [], []>} : vector<16x16xbf16>, vector<16x128xbf16>, vector<16x128xf32> -> vector<16x128xf32>
    %c0_3 = arith.constant 0 : index
    %c0_4 = arith.constant 0 : index
    %4 = vector.load %arg3[%c0_3, %c0_4] : memref<1x128xf32, #tpu.memory_space<vmem>>, vector<1x128xf32>
    %5 = vector.broadcast %4 : vector<1x128xf32> to vector<16x128xf32>
    %6 = arith.addf %3, %5 : vector<16x128xf32>
    %cst_5 = arith.constant 0.000000e+00 : f32
    %7 = vector.broadcast %cst_5 : f32 to vector<16x128xf32>
    %8 = arith.cmpf ogt, %6, %7 : vector<16x128xf32>
    %cst_6 = arith.constant 0.00999999977 : f32
    %9 = vector.broadcast %cst_6 : f32 to vector<16x128xf32>
    %10 = arith.mulf %9, %6 : vector<16x128xf32>
    %11 = arith.select %8, %6, %10 : vector<16x128xi1>, vector<16x128xf32>
    %12 = arith.truncf %11 : vector<16x128xf32> to vector<16x128xbf16>
    %c0_7 = arith.constant 0 : index
    %c0_8 = arith.constant 0 : index
    %13 = vector.load %arg4[%c0_7, %c0_8] : memref<128x128xbf16, #tpu.memory_space<vmem>>, vector<128x128xbf16>
    %cst_9 = arith.constant dense<0.000000e+00> : vector<16x128xf32>
    %14 = tpu.matmul %12, %13, %cst_9 {dimension_numbers = #tpu.dot_dimension_numbers<[1], [0], [0], [1], [0, 0, 1, 1], [], []>} : vector<16x128xbf16>, vector<128x128xbf16>, vector<16x128xf32> -> vector<16x128xf32>
    %c0_10 = arith.constant 0 : index
    %c0_11 = arith.constant 0 : index
    %15 = vector.load %arg5[%c0_10, %c0_11] : memref<1x128xf32, #tpu.memory_space<vmem>>, vector<1x128xf32>
    %16 = vector.broadcast %15 : vector<1x128xf32> to vector<16x128xf32>
    %17 = arith.addf %14, %16 : vector<16x128xf32>
    %cst_12 = arith.constant 0.000000e+00 : f32
    %18 = vector.broadcast %cst_12 : f32 to vector<16x128xf32>
    %19 = arith.cmpf ogt, %17, %18 : vector<16x128xf32>
    %cst_13 = arith.constant 0.00999999977 : f32
    %20 = vector.broadcast %cst_13 : f32 to vector<16x128xf32>
    %21 = arith.mulf %20, %17 : vector<16x128xf32>
    %22 = arith.select %19, %17, %21 : vector<16x128xi1>, vector<16x128xf32>
    %23 = arith.truncf %22 : vector<16x128xf32> to vector<16x128xbf16>
    %c0_14 = arith.constant 0 : index
    %c0_15 = arith.constant 0 : index
    %24 = vector.load %arg6[%c0_14, %c0_15] : memref<128x8xbf16, #tpu.memory_space<vmem>>, vector<128x8xbf16>
    %cst_16 = arith.constant dense<0.000000e+00> : vector<16x8xf32>
    %25 = tpu.matmul %23, %24, %cst_16 {dimension_numbers = #tpu.dot_dimension_numbers<[1], [0], [0], [1], [0, 0, 1, 1], [], []>} : vector<16x128xbf16>, vector<128x8xbf16>, vector<16x8xf32> -> vector<16x8xf32>
    %c0_17 = arith.constant 0 : index
    %c0_18 = arith.constant 0 : index
    %26 = vector.load %arg7[%c0_17, %c0_18] : memref<1x8xf32, #tpu.memory_space<vmem>>, vector<1x8xf32>
    %27 = vector.broadcast %26 : vector<1x8xf32> to vector<16x8xf32>
    %28 = arith.addf %25, %27 : vector<16x8xf32>
    %c0_19 = arith.constant 0 : index
    %c0_20 = arith.constant 0 : index
    %29 = vector.load %arg8[%c0_19, %c0_20] : memref<16x8xf32, #tpu.memory_space<vmem>>, vector<16x8xf32>
    tpu.vector_store %arg8[%c0_19, %c0_20], %28 {strides = array<i32>} : memref<16x8xf32, #tpu.memory_space<vmem>>, vector<16x8xf32>,
    return
  }
  func.func @transform_0(%arg0: i32) -> (i32, i32) {
    %c0_i32 = arith.constant 0 : i32
    %c0_i32_0 = arith.constant 0 : i32
    return %arg0, %c0_i32 : i32, i32
  }
  func.func @transform_1(%arg0: i32) -> (i32, i32) {
    %c0_i32 = arith.constant 0 : i32
    %c0_i32_0 = arith.constant 0 : i32
    %c0_i32_1 = arith.constant 0 : i32
    return %c0_i32, %c0_i32_0 : i32, i32
  }
  func.func @transform_2(%arg0: i32) -> (i32, i32) {
    %c0_i32 = arith.constant 0 : i32
    %c0_i32_0 = arith.constant 0 : i32
    %c0_i32_1 = arith.constant 0 : i32
    return %c0_i32, %c0_i32_0 : i32, i32
  }
  func.func @transform_3(%arg0: i32) -> (i32, i32) {
    %c0_i32 = arith.constant 0 : i32
    %c0_i32_0 = arith.constant 0 : i32
    %c0_i32_1 = arith.constant 0 : i32
    return %c0_i32, %c0_i32_0 : i32, i32
  }
  func.func @transform_4(%arg0: i32) -> (i32, i32) {
    %c0_i32 = arith.constant 0 : i32
    %c0_i32_0 = arith.constant 0 : i32
    %c0_i32_1 = arith.constant 0 : i32
    return %c0_i32, %c0_i32_0 : i32, i32
  }
  func.func @transform_5(%arg0: i32) -> (i32, i32) {
    %c0_i32 = arith.constant 0 : i32
    %c0_i32_0 = arith.constant 0 : i32
    %c0_i32_1 = arith.constant 0 : i32
    return %c0_i32, %c0_i32_0 : i32, i32
  }
  func.func @transform_6(%arg0: i32) -> (i32, i32) {
    %c0_i32 = arith.constant 0 : i32
    %c0_i32_0 = arith.constant 0 : i32
    %c0_i32_1 = arith.constant 0 : i32
    return %c0_i32, %c0_i32_0 : i32, i32
  }
  func.func @transform_7(%arg0: i32) -> (i32, i32) {
    %c0_i32 = arith.constant 0 : i32
    %c0_i32_0 = arith.constant 0 : i32
    return %arg0, %c0_i32 : i32, i32
  }
}

</mosaic_0001>

<llo_original>
// kernel: tpu_custom_call.1
$region0: #{tpu_custom_call.1}
  #allocation0 [shape = 'u32[]', space=smem, size = 0x4, offset = 0x4, fixed_abs, tag = 'smem constant byte address 0x4 - core index']
  #allocation1 [shape = 'u32[72,128]{1,0:T(1,128)}', space=vmem, size = 0x9000, scoped, tag = 'internal scratch']
  %s0 = inlined_call_operand.hbm [shape: f32[16,16], index: 0, kind: input, shape index: {}]
  %s1 = inlined_call_operand.hbm [shape: bf16[16,128], index: 1, kind: input, shape index: {}]
  %s2 = inlined_call_operand.vmem [shape: f32[1,128], index: 2, kind: input, shape index: {}]
  %s3 = inlined_call_operand.vmem [shape: bf16[128,128], index: 3, kind: input, shape index: {}]
  %s4 = inlined_call_operand.vmem [shape: f32[1,128], index: 4, kind: input, shape index: {}]
  %s5 = inlined_call_operand.vmem [shape: bf16[128,8], index: 5, kind: input, shape index: {}]
  %s6 = inlined_call_operand.vmem [shape: f32[1,8], index: 6, kind: input, shape index: {}]
  %s7 = inlined_call_operand.vmem [shape: f32[16,8], index: 7, kind: output, shape index: {}]
  %s8 = sld [smem:[#allocation0]]
  $region46: #{tpu_custom_call.1} parent=0
    _
  %s10 = ssub.s32 1, %s8
  %s11 = scalar_select 0, %s10, %s8
  $region1: #{tpu_custom_call.1} parent=0
    #allocation2 [shape = 'u8[8192]{0}', space=vmem, size = 0x2000, scoped, tag = 'input window, operand 0, single buffered']
    #allocation3 [shape = 's32[1]{0}', space=sflag, size = 0x4, scoped, tag = 'scoped memory for tpu_custom_call.1']
    #allocation4 [shape = 'u8[4096]{0}', space=vmem, size = 0x1000, scoped, tag = 'input window, operand 1, single buffered']
    #allocation5 [shape = 's32[1]{0}', space=sflag, size = 0x4, scoped, tag = 'scoped memory for tpu_custom_call.1']
    %12 = vsyncpa [#allocation3], 0
    %13 = vsyncpa [#allocation5], 0
    // Predicated region
    $region2: #{tpu_custom_call.1} parent=1 // pred_check
      _
    $region3: #{tpu_custom_call.1} parent=1 // pred_check_branch
      %15 = sbr.rel (0) target = $region5
    $region4: #{tpu_custom_call.1} parent=1 // pred_region
      %17 = vsyncadd [#allocation3], 0
      %s18 = sshll.u32 %s0, 4
      %s19 = int_to_ptr.hbm [resolvable:$true] %s18
      %s20 = sshll.u32 [#allocation2], 4
      %s21 = int_to_ptr.vmem [resolvable:$true] %s20
      %26 = dma.hbm_to_vmem [thread:$0]  %s19, 256, %s21, [#allocation3], 128, 128, 8
    $region5: #{tpu_custom_call.1} parent=1 // pred_fallthru
      _
    // Predicated region
    $region6: #{tpu_custom_call.1} parent=1 // pred_check
      _
    $region7: #{tpu_custom_call.1} parent=1 // pred_check_branch
      %28 = sbr.rel (0) target = $region9
    $region8: #{tpu_custom_call.1} parent=1 // pred_region
      %30 = vsyncadd [#allocation5], 0
      %s31 = sshll.u32 %s1, 4
      %s32 = int_to_ptr.hbm [resolvable:$true] %s31
      %s33 = sshll.u32 [#allocation4], 4
      %s34 = int_to_ptr.vmem [resolvable:$true] %s33
      %39 = dma.hbm_to_vmem [thread:$0]  %s32, 128, %s34, [#allocation5], 64, 64, 4
    $region9: #{tpu_custom_call.1} parent=1 // pred_fallthru
      _
    // Predicated region
    $region10: #{tpu_custom_call.1} parent=1 // pred_check
      _
    $region11: #{tpu_custom_call.1} parent=1 // pred_check_branch
      %41 = sbr.rel (0) target = $region13
    $region12: #{tpu_custom_call.1} parent=1 // pred_region
      _
    $region13: #{tpu_custom_call.1} parent=1 // pred_fallthru
      _
    // Predicated region
    $region14: #{tpu_custom_call.1} parent=1 // pred_check
      _
    $region15: #{tpu_custom_call.1} parent=1 // pred_check_branch
      %43 = sbr.rel (0) target = $region17
    $region16: #{tpu_custom_call.1} parent=1 // pred_region
      _
    $region17: #{tpu_custom_call.1} parent=1 // pred_fallthru
      _
    // Predicated region
    $region18: #{tpu_custom_call.1} parent=1 // pred_check
      _
    $region19: #{tpu_custom_call.1} parent=1 // pred_check_branch
      %45 = sbr.rel (0) target = $region21
    $region20: #{tpu_custom_call.1} parent=1 // pred_region
      _
    $region21: #{tpu_custom_call.1} parent=1 // pred_fallthru
      _
    // Predicated region
    $region22: #{tpu_custom_call.1} parent=1 // pred_check
      _
    $region23: #{tpu_custom_call.1} parent=1 // pred_check_branch
      %47 = sbr.rel (0) target = $region25
    $region24: #{tpu_custom_call.1} parent=1 // pred_region
      _
    $region25: #{tpu_custom_call.1} parent=1 // pred_fallthru
      _
    // Predicated region
    $region26: #{tpu_custom_call.1} parent=1 // pred_check
      _
    $region27: #{tpu_custom_call.1} parent=1 // pred_check_branch
      %49 = sbr.rel (0) target = $region29
    $region28: #{tpu_custom_call.1} parent=1 // pred_region
      _
    $region29: #{tpu_custom_call.1} parent=1 // pred_fallthru
      _
    // Predicated region
    $region30: #{tpu_custom_call.1} parent=1 // pred_check
      _
    $region31: #{tpu_custom_call.1} parent=1 // pred_check_branch
      %51 = sbr.rel (0) target = $region33
    $region32: #{tpu_custom_call.1} parent=1 // pred_region
      %53 = dma.done [#allocation3], 256
    $region33: #{tpu_custom_call.1} parent=1 // pred_fallthru
      _
    // Predicated region
    $region34: #{tpu_custom_call.1} parent=1 // pred_check
      _
    $region35: #{tpu_custom_call.1} parent=1 // pred_check_branch
      %55 = sbr.rel (0) target = $region37
    $region36: #{tpu_custom_call.1} parent=1 // pred_region
      %57 = dma.done [#allocation5], 128
    $region37: #{tpu_custom_call.1} parent=1 // pred_fallthru
      _
    %v59 = vld [vmem:[#allocation2] sm:$0xff]
    %v60 = vld [vmem:[#allocation2 + $0x8] sm:$0xff]
    %v61 = vpack.c.bf16 %v60, %v59
    %v62 = vld [vmem:[#allocation4] sm:$0xf]
    %v63 = vld [vmem:[#allocation4 + $0x4] sm:$0xf]
    %v64 = vld [vmem:[%s2] sm:$0x1]
    %v66 = vperm.slane %v64, 0
    %v70 = vunpack.c.l.b16 %v62
    %v71 = vunpack.c.l.b16 %v63
    %v72 = vpack.c.b16 %v71, %v70
    %vm74 = vcmask 130048
    %v76 = vsel %vm74, %v61, 0
    %78 = vmatpush.bf16.msra.mxu0 0
    %79 = vmatpush.bf16.msra.mxu0 0
    %80 = vmatpush.bf16.msra.mxu0 0
    %81 = vmatpush.bf16.msra.mxu0 0
    %82 = vmatpush.bf16.msra.mxu0 0
    %83 = vmatpush.bf16.msra.mxu0 0
    %84 = vmatpush.bf16.msra.mxu0 0
    %85 = vmatpush.bf16.msra.mxu0 %v72
    %86 = vmatmul.bf16.gmra.mxu0 %v76
    %v87 = vpop.f32.mrf.mxu0
    %v88 = vadd.f32 %v66, %v87
    %v89 = vpop.f32.mrf.mxu0
    %v90 = vadd.f32 %v66, %v89
    %91 = vdwg.mxu0
    %vm92 = vcmp.gt.f32.partialorder %v88, 0.0
    %vm93 = vcmp.gt.f32.partialorder %v90, 0.0
    %v94 = vmul.f32 %v88, 0.01
    %v95 = vmul.f32 %v90, 0.01
    %v96 = vsel %vm92, %v88, %v94
    %v97 = vsel %vm93, %v90, %v95
    %v98 = vpack.c.bf16 %v97, %v96
    %v99 = vld [vmem:[%s3] sm:$0xf]
    %v100 = vld [vmem:[%s3 + $0x4] sm:$0xf]
    %v101 = vld [vmem:[%s3 + $0x8] sm:$0xf]
    %v102 = vld [vmem:[%s3 + $0xc] sm:$0xf]
    %v103 = vld [vmem:[%s3 + $0x10] sm:$0xf]
    %v104 = vld [vmem:[%s3 + $0x14] sm:$0xf]
    %v105 = vld [vmem:[%s3 + $0x18] sm:$0xf]
    %v106 = vld [vmem:[%s3 + $0x1c] sm:$0xf]
    %v107 = vld [vmem:[%s3 + $0x20] sm:$0xf]
    %v108 = vld [vmem:[%s3 + $0x24] sm:$0xf]
    %v109 = vld [vmem:[%s3 + $0x28] sm:$0xf]
    %v110 = vld [vmem:[%s3 + $0x2c] sm:$0xf]
    %v111 = vld [vmem:[%s3 + $0x30] sm:$0xf]
    %v112 = vld [vmem:[%s3 + $0x34] sm:$0xf]
    %v113 = vld [vmem:[%s3 + $0x38] sm:$0xf]
    %v114 = vld [vmem:[%s3 + $0x3c] sm:$0xf]
    %v115 = vld [vmem:[%s4] sm:$0x1]
    %v117 = vperm.slane %v115, 0
    %v135 = vunpack.c.l.b16 %v99
    %v136 = vunpack.c.l.b16 %v100
    %v137 = vunpack.c.l.b16 %v101
    %v138 = vunpack.c.l.b16 %v102
    %v139 = vunpack.c.l.b16 %v103
    %v140 = vunpack.c.l.b16 %v104
    %v141 = vunpack.c.l.b16 %v105
    %v142 = vunpack.c.l.b16 %v106
    %v143 = vunpack.c.l.b16 %v107
    %v144 = vunpack.c.l.b16 %v108
    %v145 = vunpack.c.l.b16 %v109
    %v146 = vunpack.c.l.b16 %v110
    %v147 = vunpack.c.l.b16 %v111
    %v148 = vunpack.c.l.b16 %v112
    %v149 = vunpack.c.l.b16 %v113
    %v150 = vunpack.c.l.b16 %v114
    %v151 = vpack.c.b16 %v136, %v135
    %v152 = vpack.c.b16 %v138, %v137
    %v153 = vpack.c.b16 %v140, %v139
    %v154 = vpack.c.b16 %v142, %v141
    %v155 = vpack.c.b16 %v144, %v143
    %v156 = vpack.c.b16 %v146, %v145
    %v157 = vpack.c.b16 %v148, %v147
    %v158 = vpack.c.b16 %v150, %v149
    %167 = vmatpush.bf16.msra.mxu0 %v158
    %168 = vmatpush.bf16.msra.mxu0 %v157
    %169 = vmatpush.bf16.msra.mxu0 %v156
    %170 = vmatpush.bf16.msra.mxu0 %v155
    %171 = vmatpush.bf16.msra.mxu0 %v154
    %172 = vmatpush.bf16.msra.mxu0 %v153
    %173 = vmatpush.bf16.msra.mxu0 %v152
    %174 = vmatpush.bf16.msra.mxu0 %v151
    %175 = vmatmul.bf16.gmra.mxu0 %v98
    %v176 = vpop.f32.mrf.mxu0
    %v177 = vadd.f32 %v117, %v176
    %v178 = vpop.f32.mrf.mxu0
    %v179 = vadd.f32 %v117, %v178
    %180 = vdwg.mxu0
    %vm181 = vcmp.gt.f32.partialorder %v177, 0.0
    %vm182 = vcmp.gt.f32.partialorder %v179, 0.0
    %v183 = vmul.f32 %v177, 0.01
    %v184 = vmul.f32 %v179, 0.01
    %v185 = vsel %vm181, %v177, %v183
    %v186 = vsel %vm182, %v179, %v184
    %v187 = vpack.c.bf16 %v186, %v185
    %v188 = vld [vmem:[%s5] sm:$0xf]
    %v189 = vld [vmem:[%s5 + $0x4] sm:$0xf]
    %v190 = vld [vmem:[%s5 + $0x8] sm:$0xf]
    %v191 = vld [vmem:[%s5 + $0xc] sm:$0xf]
    %v192 = vld [vmem:[%s5 + $0x10] sm:$0xf]
    %v193 = vld [vmem:[%s5 + $0x14] sm:$0xf]
    %v194 = vld [vmem:[%s5 + $0x18] sm:$0xf]
    %v195 = vld [vmem:[%s5 + $0x1c] sm:$0xf]
    %v196 = vld [vmem:[%s5 + $0x20] sm:$0xf]
    %v197 = vld [vmem:[%s5 + $0x24] sm:$0xf]
    %v198 = vld [vmem:[%s5 + $0x28] sm:$0xf]
    %v199 = vld [vmem:[%s5 + $0x2c] sm:$0xf]
    %v200 = vld [vmem:[%s5 + $0x30] sm:$0xf]
    %v201 = vld [vmem:[%s5 + $0x34] sm:$0xf]
    %v202 = vld [vmem:[%s5 + $0x38] sm:$0xf]
    %v203 = vld [vmem:[%s5 + $0x3c] sm:$0xf]
    %v204 = vld [vmem:[%s6] sm:$0x1]
    %v206 = vperm.slane %v204, 0
    %v224 = vunpack.c.l.b16 %v188
    %v225 = vunpack.c.l.b16 %v189
    %v226 = vunpack.c.l.b16 %v190
    %v227 = vunpack.c.l.b16 %v191
    %v228 = vunpack.c.l.b16 %v192
    %v229 = vunpack.c.l.b16 %v193
    %v230 = vunpack.c.l.b16 %v194
    %v231 = vunpack.c.l.b16 %v195
    %v232 = vunpack.c.l.b16 %v196
    %v233 = vunpack.c.l.b16 %v197
    %v234 = vunpack.c.l.b16 %v198
    %v235 = vunpack.c.l.b16 %v199
    %v236 = vunpack.c.l.b16 %v200
    %v237 = vunpack.c.l.b16 %v201
    %v238 = vunpack.c.l.b16 %v202
    %v239 = vunpack.c.l.b16 %v203
    %v240 = vpack.c.b16 %v225, %v224
    %v241 = vpack.c.b16 %v227, %v226
    %v242 = vpack.c.b16 %v229, %v228
    %v243 = vpack.c.b16 %v231, %v230
    %v244 = vpack.c.b16 %v233, %v232
    %v245 = vpack.c.b16 %v235, %v234
    %v246 = vpack.c.b16 %v237, %v236
    %v247 = vpack.c.b16 %v239, %v238
    %256 = vmatpush.bf16.msra.mxu0 %v247
    %257 = vmatpush.bf16.msra.mxu0 %v246
    %258 = vmatpush.bf16.msra.mxu0 %v245
    %259 = vmatpush.bf16.msra.mxu0 %v244
    %260 = vmatpush.bf16.msra.mxu0 %v243
    %261 = vmatpush.bf16.msra.mxu0 %v242
    %262 = vmatpush.bf16.msra.mxu0 %v241
    %263 = vmatpush.bf16.msra.mxu0 %v240
    %264 = vmatmul.bf16.gmra.mxu0 %v187
    %v265 = vpop.f32.mrf.mxu0
    %v266 = vadd.f32 %v206, %v265
    %v267 = vpop.f32.mrf.mxu0
    %v268 = vadd.f32 %v206, %v267
    %269 = vdwg.mxu0
    %vm270 = vcmask 64512
    %271 = vst.msk [vmem:[%s7] sm:$0xff] %vm270, %v266
    %272 = vst.msk [vmem:[%s7 + $0x8] sm:$0xff] %vm270, %v268
    // Predicated region
    $region38: #{tpu_custom_call.1} parent=1 // pred_check
      _
    $region39: #{tpu_custom_call.1} parent=1 // pred_check_branch
      %274 = sbr.rel (0) target = $region41
    $region40: #{tpu_custom_call.1} parent=1 // pred_region
      _
    $region41: #{tpu_custom_call.1} parent=1 // pred_fallthru
      _
    // Predicated region
    $region42: #{tpu_custom_call.1} parent=1 // pred_check
      _
    $region43: #{tpu_custom_call.1} parent=1 // pred_check_branch
      %276 = sbr.rel (0) target = $region45
    $region44: #{tpu_custom_call.1} parent=1 // pred_region
      _
    $region45: #{tpu_custom_call.1} parent=1 // pred_fallthru
      _
    %277 = vsyncpa [#allocation3], 1
    %278 = vsyncpa [#allocation5], 1

</llo_original>
